<compile_context>
chip_gen: v5e
topology: v5e:2x2
jax: 0.10.0
libtpu: 0.0.40
codegen_flags: <defaults>
</compile_context>

<pallas_src>
import functools
import math

import jax
import jax.numpy as jnp
from jax import lax
from jax.experimental import pallas as pl
from jax.experimental.pallas import tpu as pltpu


# Contract lhs dim 1 with rhs dim 1  (x @ W.T without materializing W.T).
_DN = (((1,), (1,)), ((), ()))


def _round_up(x, m):
    return ((x + m - 1) // m) * m


def _vmem_limit_bytes(default=48 * 1024 * 1024):
    """Generation-aware VMEM ceiling (~3/4 of physical, capped at 96 MiB)."""
    try:
        info = pltpu.get_tpu_info()
        cap = getattr(info, "vmem_capacity_bytes", None)
        if cap is None:
            return default
        return max(32 * 1024 * 1024, min(int(cap) * 3 // 4, 96 * 1024 * 1024))
    except Exception:
        return default


# ----------------------------- kernels ------------------------------------- #

def _linear_kernel(x_ref, w_ref, b_ref, o_ref, acc_ref, *, mxu_dtype):
    k = pl.program_id(2)

    @pl.when(k == 0)
    def _():
        acc_ref[...] = jnp.zeros_like(acc_ref)

    x = x_ref[...]
    w = w_ref[...]                          # (tn, tk) tile of W (out-major)
    if mxu_dtype is not None and x.dtype != mxu_dtype:
        x = x.astype(mxu_dtype)
    # w is already delivered in mxu_dtype by the wrapper when requested.
    acc_ref[...] += lax.dot_general(x, w, _DN,
                                    preferred_element_type=jnp.float32)

    @pl.when(k == pl.num_programs(2) - 1)
    def _():
        o_ref[...] = (acc_ref[...] + b_ref[...].astype(jnp.float32)
                      ).astype(o_ref.dtype)


def _ibp_linear_kernel(z0_ref, zu_ref, zl_ref, w_ref, b_ref,
                       o0_ref, ou_ref, ol_ref,
                       acc_z0_ref, acc_s_ref, acc_d_ref, *, mxu_dtype):
    k = pl.program_id(2)

    @pl.when(k == 0)
    def _():
        acc_z0_ref[...] = jnp.zeros_like(acc_z0_ref)
        acc_s_ref[...] = jnp.zeros_like(acc_s_ref)
        acc_d_ref[...] = jnp.zeros_like(acc_d_ref)

    # z0 feeds the MXU unchanged (no f32 round trip).
    z0 = z0_ref[...]
    # s/d formed in f32 for bound tightness; the 0.5 is deferred to the
    # epilogue (mu = s/2, r = d/2).
    zu = zu_ref[...].astype(jnp.float32)
    zl = zl_ref[...].astype(jnp.float32)
    s = zu + zl
    d = zu - zl

    w = w_ref[...]                          # (tn, tk), pre-cast by wrapper
    w_abs = jnp.abs(w)                      # once per weight tile / grid step

    if mxu_dtype is not None:
        if z0.dtype != mxu_dtype:
            z0 = z0.astype(mxu_dtype)
        s = s.astype(mxu_dtype)
        d = d.astype(mxu_dtype)

    # Three matmuls sharing the same weight tile; no concat copy.
    acc_z0_ref[...] += lax.dot_general(z0, w, _DN,
                                       preferred_element_type=jnp.float32)
    acc_s_ref[...] += lax.dot_general(s, w, _DN,
                                      preferred_element_type=jnp.float32)
    acc_d_ref[...] += lax.dot_general(d, w_abs, _DN,
                                      preferred_element_type=jnp.float32)

    @pl.when(k == pl.num_programs(2) - 1)
    def _():
        b = b_ref[...].astype(jnp.float32)               # (1, tn)
        acc_s = acc_s_ref[...]
        acc_d = acc_d_ref[...]
        # mu' = 0.5*acc_s + b ; r' = 0.5*acc_d
        o0_ref[...] = (acc_z0_ref[...] + b).astype(o0_ref.dtype)
        ou_ref[...] = (0.5 * (acc_s + acc_d) + b).astype(ou_ref.dtype)
        ol_ref[...] = (0.5 * (acc_s - acc_d) + b).astype(ol_ref.dtype)


# ----------------------------- wrapper -------------------------------------- #

def _pad2(a, rows, cols):
    pr, pc = rows - a.shape[0], cols - a.shape[1]
    if pr or pc:
        a = jnp.pad(a, ((0, pr), (0, pc)))
    return a


def ibp_linear_forward(params, *z, ibp=False, mxu_dtype=None,
                       bm=256, tn=512, tk=512):
    """Mirror of IBPLinear.forward.

    params = dict(weight=(out_dim, in_dim), bias=(out_dim,)).
    Tile sizes (bm, tn, tk) default to large MXU/HBM-friendly values and are
    clamped to the (padded) problem dims.  mxu_dtype=jnp.bfloat16 runs the
    matmuls with bf16 operands and f32 accumulation; for best performance
    store params["weight"] in bf16 once at load time (the wrapper otherwise
    casts it per call).  NOTE: bf16 is not sound for *certified* bounds.
    """
    w = params["weight"]
    b = params["bias"]
    out_dim, in_dim = w.shape
    assert len(z) == (3 if ibp else 1)
    batch = z[0].shape[0]
    dtype = z[0].dtype

    # Tile sizes / padded dims: lane-dense (multiple-of-128) feature dims,
    # sublane-aligned (multiple-of-8) batch rows.
    Np_full = _round_up(out_dim, 128)
    bm = min(bm, _round_up(batch, 8))
    tn = min(tn, Np_full)
    tk = min(tk, _round_up(in_dim, 128))
    Bp = _round_up(batch, bm)

    # Megacore: if the batch axis has a single block, make sure the
    # out-feature axis exposes >= 2 parallel blocks so both TensorCores work.
    if Bp // bm == 1 and Np_full // tn < 2 and Np_full >= 256:
        tn = min(tn, max(128, (Np_full // 2) // 128 * 128))

    Np = _round_up(out_dim, tn)
    Kp = _round_up(in_dim, tk)

    # Weight stream in the MXU dtype (ideally already bf16 at load time).
    if mxu_dtype is not None and w.dtype != mxu_dtype:
        w = w.astype(mxu_dtype)
    wp = _pad2(w, Np, Kp)                        # (Np, Kp), NOT transposed
    bp = _pad2(b.reshape(1, out_dim), 1, Np)     # (1, Np)
    zp = [_pad2(zz, Bp, Kp) for zz in z]

    grid = (Bp // bm, Np // tn, Kp // tk)

    act_spec = pl.BlockSpec((bm, tk), lambda i, j, k: (i, k))
    w_spec = pl.BlockSpec((tn, tk), lambda i, j, k: (j, k))
    b_spec = pl.BlockSpec((1, tn), lambda i, j, k: (0, j))
    out_spec = pl.BlockSpec((bm, tn), lambda i, j, k: (i, j))

    compiler_params = pltpu.CompilerParams(
        dimension_semantics=("parallel", "parallel", "arbitrary"),
        vmem_limit_bytes=_vmem_limit_bytes(),
    )

    itemsize = jnp.dtype(dtype).itemsize
    n_mm = 3 if ibp else 1
    cost = pl.CostEstimate(
        flops=2 * n_mm * batch * in_dim * out_dim,
        transcendentals=0,
        bytes_accessed=int(itemsize * n_mm * batch * (in_dim + out_dim)
                           + jnp.dtype(wp.dtype).itemsize * wp.size
                           + jnp.dtype(bp.dtype).itemsize * bp.size),
    )

    if not ibp:
        out = pl.pallas_call(
            functools.partial(_linear_kernel, mxu_dtype=mxu_dtype),
            out_shape=jax.ShapeDtypeStruct((Bp, Np), dtype),
            grid_spec=pltpu.PrefetchScalarGridSpec(
                num_scalar_prefetch=0,
                grid=grid,
                in_specs=[act_spec, w_spec, b_spec],
                out_specs=out_spec,
                scratch_shapes=[pltpu.VMEM((bm, tn), jnp.float32)],
            ),
            compiler_params=compiler_params,
            cost_estimate=cost,
        )(zp[0], wp, bp)
        return (out[:batch, :out_dim],)

    outs = pl.pallas_call(
        functools.partial(_ibp_linear_kernel, mxu_dtype=mxu_dtype),
        out_shape=tuple(jax.ShapeDtypeStruct((Bp, Np), dtype) for _ in range(3)),
        grid_spec=pltpu.PrefetchScalarGridSpec(
            num_scalar_prefetch=0,
            grid=grid,
            in_specs=[act_spec, act_spec, act_spec, w_spec, b_spec],
            out_specs=(out_spec, out_spec, out_spec),
            scratch_shapes=[pltpu.VMEM((bm, tn), jnp.float32),   # z0 @ W.T
                            pltpu.VMEM((bm, tn), jnp.float32),   # (zu+zl) @ W.T
                            pltpu.VMEM((bm, tn), jnp.float32)],  # (zu-zl) @ |W|.T
        ),
        compiler_params=compiler_params,
        cost_estimate=cost,
    )(zp[0], zp[1], zp[2], wp, bp)
    return tuple(o[:batch, :out_dim] for o in outs)


def init_ibp_linear(key, in_dim, out_dim, dtype=jnp.float32):
    """Deterministic init mimicking nn.Linear defaults (uniform +/- 1/sqrt(in))."""
    kw, kb = jax.random.split(key)
    bound = 1.0 / math.sqrt(in_dim)
    weight = jax.random.uniform(kw, (out_dim, in_dim), dtype,
                                minval=-bound, maxval=bound)
    bias = jax.random.uniform(kb, (out_dim,), dtype, minval=-bound, maxval=bound)
    return {"weight": weight, "bias": bias}


# ----------------------------- reference ------------------------------------ #

def _reference(params, z0, zu, zl):
    w, b = params["weight"], params["bias"]
    o0 = z0 @ w.T + b
    mu = (zu + zl) / 2
    r = (zu - zl) / 2
    mu_o = mu @ w.T + b
    r_o = r @ jnp.abs(w).T
    return o0, mu_o + r_o, mu_o - r_o


# ----------------------------- main ------------------------------------------ #

if __name__ == "__main__":
    key = jax.random.PRNGKey(0)
    k_p1, k_x1, k_e1, k_p2, k_x2, k_e2 = jax.random.split(key, 6)

    # --- small demo shape (single-tile grid after padding to 128 lanes) -----
    batch, in_dim, out_dim = 8, 32, 32
    params = init_ibp_linear(k_p1, in_dim, out_dim)
    x = jax.random.normal(k_x1, (batch, in_dim), jnp.float32)
    eps = 0.1 * jnp.abs(jax.random.normal(k_e1, (batch, in_dim), jnp.float32))
    zu, zl = x + eps, x - eps

    o0, ou, ol = ibp_linear_forward(params, x, zu, zl, ibp=True)
    (o_plain,) = ibp_linear_forward(params, x, ibp=False)
    jax.block_until_ready((o0, ou, ol, o_plain))

    r0, ru, rl = _reference(params, x, zu, zl)
    assert jnp.allclose(o0, r0, atol=1e-5, rtol=1e-5)
    assert jnp.allclose(ou, ru, atol=1e-5, rtol=1e-5)
    assert jnp.allclose(ol, rl, atol=1e-5, rtol=1e-5)
    assert jnp.allclose(o_plain, r0, atol=1e-5, rtol=1e-5)

    # --- exercise the multi-step (batch, N, K) tiled grid with small tiles --
    batch2, in2, out2 = 16, 256, 384
    params2 = init_ibp_linear(k_p2, in2, out2)
    x2 = jax.random.normal(k_x2, (batch2, in2), jnp.float32)
    eps2 = 0.1 * jnp.abs(jax.random.normal(k_e2, (batch2, in2), jnp.float32))
    zu2, zl2 = x2 + eps2, x2 - eps2
    r0b, rub, rlb = _reference(params2, x2, zu2, zl2)

    o0b, oub, olb = ibp_linear_forward(params2, x2, zu2, zl2, ibp=True,
                                       bm=8, tn=128, tk=128)  # grid (2, 3, 2)
    jax.block_until_ready((o0b, oub, olb))
    assert jnp.allclose(o0b, r0b, atol=1e-4, rtol=1e-4)
    assert jnp.allclose(oub, rub, atol=1e-4, rtol=1e-4)
    assert jnp.allclose(olb, rlb, atol=1e-4, rtol=1e-4)

    # --- default (large) tiles, f32 ------------------------------------------
    o0d, oud, old = ibp_linear_forward(params2, x2, zu2, zl2, ibp=True)
    jax.block_until_ready((o0d, oud, old))
    assert jnp.allclose(o0d, r0b, atol=1e-4, rtol=1e-4)
    assert jnp.allclose(oud, rub, atol=1e-4, rtol=1e-4)
    assert jnp.allclose(old, rlb, atol=1e-4, rtol=1e-4)

    # --- bf16 MXU operands, f32 accumulation (looser tolerance) -------------
    # Weight converted to bf16 once ("at parameter-load time") so the kernel
    # streams half the bytes from HBM.  Not sound for certified bounds.
    params2_bf16 = {"weight": params2["weight"].astype(jnp.bfloat16),
                    "bias": params2["bias"]}
    o0c, ouc, olc = ibp_linear_forward(params2_bf16, x2, zu2, zl2, ibp=True,
                                       mxu_dtype=jnp.bfloat16)
    jax.block_until_ready((o0c, ouc, olc))
    assert jnp.allclose(o0c, r0b, atol=5e-2, rtol=5e-2)
    assert jnp.allclose(ouc, rub, atol=5e-2, rtol=5e-2)
    assert jnp.allclose(olc, rlb, atol=5e-2, rtol=5e-2)

    print("KERNEL_OK")
</pallas_src>

<mosaic_0001>
module attributes {stable_mosaic.version = 11 : i64} {
  func.func @_ibp_linear_kernel(%arg0: i32, %arg1: i32, %arg2: i32, %arg3: memref<8x128xf32, #tpu.memory_space<vmem>>, %arg4: memref<8x128xf32, #tpu.memory_space<vmem>>, %arg5: memref<8x128xf32, #tpu.memory_space<vmem>>, %arg6: memref<128x128xf32, #tpu.memory_space<vmem>>, %arg7: memref<1x128xf32, #tpu.memory_space<vmem>>, %arg8: memref<8x128xf32, #tpu.memory_space<vmem>>, %arg9: memref<8x128xf32, #tpu.memory_space<vmem>>, %arg10: memref<8x128xf32, #tpu.memory_space<vmem>>, %arg11: memref<8x128xf32, #tpu.memory_space<vmem>>, %arg12: memref<8x128xf32, #tpu.memory_space<vmem>>, %arg13: memref<8x128xf32, #tpu.memory_space<vmem>>) attributes {dimension_semantics = [#tpu.dimension_semantics<parallel>, #tpu.dimension_semantics<parallel>, #tpu.dimension_semantics<arbitrary>], iteration_bounds = array<i64: 1, 1, 1>, scalar_prefetch = 0 : i64, scratch_operands = 3 : i64, tpu.core_type = #tpu.core_type<tc>, window_params = [{transform_indices = @transform_0, window_bounds = array<i64: 8, 128>}, {transform_indices = @transform_1, window_bounds = array<i64: 8, 128>}, {transform_indices = @transform_2, window_bounds = array<i64: 8, 128>}, {transform_indices = @transform_3, window_bounds = array<i64: 128, 128>}, {transform_indices = @transform_4, window_bounds = array<i64: 1, 128>}, {transform_indices = @transform_5, window_bounds = array<i64: 8, 128>}, {transform_indices = @transform_6, window_bounds = array<i64: 8, 128>}, {transform_indices = @transform_7, window_bounds = array<i64: 8, 128>}]} {
    %c0_i32 = arith.constant 0 : i32
    %0 = arith.cmpi eq, %arg2, %c0_i32 : i32
    %1 = arith.extui %0 : i1 to i32
    %c0_i32_0 = arith.constant 0 : i32
    %2 = arith.cmpi ne, %1, %c0_i32_0 : i32
    scf.if %2 {
      %cst_24 = arith.constant 0.000000e+00 : f32
      %25 = vector.broadcast %cst_24 : f32 to vector<8x128xf32>
      %c0_25 = arith.constant 0 : index
      %c0_26 = arith.constant 0 : index
      %26 = vector.load %arg11[%c0_25, %c0_26] : memref<8x128xf32, #tpu.memory_space<vmem>>, vector<8x128xf32>
      tpu.vector_store %arg11[%c0_25, %c0_26], %25 {strides = array<i32>} : memref<8x128xf32, #tpu.memory_space<vmem>>, vector<8x128xf32>,
      %cst_27 = arith.constant 0.000000e+00 : f32
      %27 = vector.broadcast %cst_27 : f32 to vector<8x128xf32>
      %c0_28 = arith.constant 0 : index
      %c0_29 = arith.constant 0 : index
      %28 = vector.load %arg12[%c0_28, %c0_29] : memref<8x128xf32, #tpu.memory_space<vmem>>, vector<8x128xf32>
      tpu.vector_store %arg12[%c0_28, %c0_29], %27 {strides = array<i32>} : memref<8x128xf32, #tpu.memory_space<vmem>>, vector<8x128xf32>,
      %cst_30 = arith.constant 0.000000e+00 : f32
      %29 = vector.broadcast %cst_30 : f32 to vector<8x128xf32>
      %c0_31 = arith.constant 0 : index
      %c0_32 = arith.constant 0 : index
      %30 = vector.load %arg13[%c0_31, %c0_32] : memref<8x128xf32, #tpu.memory_space<vmem>>, vector<8x128xf32>
      tpu.vector_store %arg13[%c0_31, %c0_32], %29 {strides = array<i32>} : memref<8x128xf32, #tpu.memory_space<vmem>>, vector<8x128xf32>,
    } else {
    }
    %c0 = arith.constant 0 : index
    %c0_1 = arith.constant 0 : index
    %3 = vector.load %arg3[%c0, %c0_1] : memref<8x128xf32, #tpu.memory_space<vmem>>, vector<8x128xf32>
    %c0_2 = arith.constant 0 : index
    %c0_3 = arith.constant 0 : index
    %4 = vector.load %arg4[%c0_2, %c0_3] : memref<8x128xf32, #tpu.memory_space<vmem>>, vector<8x128xf32>
    %c0_4 = arith.constant 0 : index
    %c0_5 = arith.constant 0 : index
    %5 = vector.load %arg5[%c0_4, %c0_5] : memref<8x128xf32, #tpu.memory_space<vmem>>, vector<8x128xf32>
    %6 = arith.addf %4, %5 : vector<8x128xf32>
    %7 = arith.subf %4, %5 : vector<8x128xf32>
    %c0_6 = arith.constant 0 : index
    %c0_7 = arith.constant 0 : index
    %8 = vector.load %arg6[%c0_6, %c0_7] : memref<128x128xf32, #tpu.memory_space<vmem>>, vector<128x128xf32>
    %9 = math.absf %8 : vector<128x128xf32>
    %c0_8 = arith.constant 0 : index
    %c0_9 = arith.constant 0 : index
    %10 = vector.load %arg11[%c0_8, %c0_9] : memref<8x128xf32, #tpu.memory_space<vmem>>, vector<8x128xf32>
    %cst = arith.constant dense<0.000000e+00> : vector<8x128xf32>
    %11 = tpu.matmul %3, %8, %cst {dimension_numbers = #tpu.dot_dimension_numbers<[1], [1], [0], [0], [0, 0, 1, 0], [], []>} : vector<8x128xf32>, vector<128x128xf32>, vector<8x128xf32> -> vector<8x128xf32>
    %12 = arith.addf %10, %11 : vector<8x128xf32>
    %c0_10 = arith.constant 0 : index
    %c0_11 = arith.constant 0 : index
    %13 = vector.load %arg11[%c0_10, %c0_11] : memref<8x128xf32, #tpu.memory_space<vmem>>, vector<8x128xf32>
    tpu.vector_store %arg11[%c0_10, %c0_11], %12 {strides = array<i32>} : memref<8x128xf32, #tpu.memory_space<vmem>>, vector<8x128xf32>,
    %c0_12 = arith.constant 0 : index
    %c0_13 = arith.constant 0 : index
    %14 = vector.load %arg12[%c0_12, %c0_13] : memref<8x128xf32, #tpu.memory_space<vmem>>, vector<8x128xf32>
    %cst_14 = arith.constant dense<0.000000e+00> : vector<8x128xf32>
    %15 = tpu.matmul %6, %8, %cst_14 {dimension_numbers = #tpu.dot_dimension_numbers<[1], [1], [0], [0], [0, 0, 1, 0], [], []>} : vector<8x128xf32>, vector<128x128xf32>, vector<8x128xf32> -> vector<8x128xf32>
    %16 = arith.addf %14, %15 : vector<8x128xf32>
    %c0_15 = arith.constant 0 : index
    %c0_16 = arith.constant 0 : index
    %17 = vector.load %arg12[%c0_15, %c0_16] : memref<8x128xf32, #tpu.memory_space<vmem>>, vector<8x128xf32>
    tpu.vector_store %arg12[%c0_15, %c0_16], %16 {strides = array<i32>} : memref<8x128xf32, #tpu.memory_space<vmem>>, vector<8x128xf32>,
    %c0_17 = arith.constant 0 : index
    %c0_18 = arith.constant 0 : index
    %18 = vector.load %arg13[%c0_17, %c0_18] : memref<8x128xf32, #tpu.memory_space<vmem>>, vector<8x128xf32>
    %cst_19 = arith.constant dense<0.000000e+00> : vector<8x128xf32>
    %19 = tpu.matmul %7, %9, %cst_19 {dimension_numbers = #tpu.dot_dimension_numbers<[1], [1], [0], [0], [0, 0, 1, 0], [], []>} : vector<8x128xf32>, vector<128x128xf32>, vector<8x128xf32> -> vector<8x128xf32>
    %20 = arith.addf %18, %19 : vector<8x128xf32>
    %c0_20 = arith.constant 0 : index
    %c0_21 = arith.constant 0 : index
    %21 = vector.load %arg13[%c0_20, %c0_21] : memref<8x128xf32, #tpu.memory_space<vmem>>, vector<8x128xf32>
    tpu.vector_store %arg13[%c0_20, %c0_21], %20 {strides = array<i32>} : memref<8x128xf32, #tpu.memory_space<vmem>>, vector<8x128xf32>,
    %c0_i32_22 = arith.constant 0 : i32
    %22 = arith.cmpi eq, %arg2, %c0_i32_22 : i32
    %23 = arith.extui %22 : i1 to i32
    %c0_i32_23 = arith.constant 0 : i32
    %24 = arith.cmpi ne, %23, %c0_i32_23 : i32
    scf.if %24 {
      %c0_24 = arith.constant 0 : index
      %c0_25 = arith.constant 0 : index
      %25 = vector.load %arg7[%c0_24, %c0_25] : memref<1x128xf32, #tpu.memory_space<vmem>>, vector<1x128xf32>
      %c0_26 = arith.constant 0 : index
      %c0_27 = arith.constant 0 : index
      %26 = vector.load %arg12[%c0_26, %c0_27] : memref<8x128xf32, #tpu.memory_space<vmem>>, vector<8x128xf32>
      %c0_28 = arith.constant 0 : index
      %c0_29 = arith.constant 0 : index
      %27 = vector.load %arg13[%c0_28, %c0_29] : memref<8x128xf32, #tpu.memory_space<vmem>>, vector<8x128xf32>
      %c0_30 = arith.constant 0 : index
      %c0_31 = arith.constant 0 : index
      %28 = vector.load %arg11[%c0_30, %c0_31] : memref<8x128xf32, #tpu.memory_space<vmem>>, vector<8x128xf32>
      %29 = vector.broadcast %25 : vector<1x128xf32> to vector<8x128xf32>
      %30 = arith.addf %28, %29 : vector<8x128xf32>
      %c0_32 = arith.constant 0 : index
      %c0_33 = arith.constant 0 : index
      %31 = vector.load %arg8[%c0_32, %c0_33] : memref<8x128xf32, #tpu.memory_space<vmem>>, vector<8x128xf32>
      tpu.vector_store %arg8[%c0_32, %c0_33], %30 {strides = array<i32>} : memref<8x128xf32, #tpu.memory_space<vmem>>, vector<8x128xf32>,
      %32 = arith.addf %26, %27 : vector<8x128xf32>
      %cst_34 = arith.constant 5.000000e-01 : f32
      %33 = vector.broadcast %cst_34 : f32 to vector<8x128xf32>
      %34 = arith.mulf %33, %32 : vector<8x128xf32>
      %35 = vector.broadcast %25 : vector<1x128xf32> to vector<8x128xf32>
      %36 = arith.addf %34, %35 : vector<8x128xf32>
      %c0_35 = arith.constant 0 : index
      %c0_36 = arith.constant 0 : index
      %37 = vector.load %arg9[%c0_35, %c0_36] : memref<8x128xf32, #tpu.memory_space<vmem>>, vector<8x128xf32>
      tpu.vector_store %arg9[%c0_35, %c0_36], %36 {strides = array<i32>} : memref<8x128xf32, #tpu.memory_space<vmem>>, vector<8x128xf32>,
      %38 = arith.subf %26, %27 : vector<8x128xf32>
      %cst_37 = arith.constant 5.000000e-01 : f32
      %39 = vector.broadcast %cst_37 : f32 to vector<8x128xf32>
      %40 = arith.mulf %39, %38 : vector<8x128xf32>
      %41 = vector.broadcast %25 : vector<1x128xf32> to vector<8x128xf32>
      %42 = arith.addf %40, %41 : vector<8x128xf32>
      %c0_38 = arith.constant 0 : index
      %c0_39 = arith.constant 0 : index
      %43 = vector.load %arg10[%c0_38, %c0_39] : memref<8x128xf32, #tpu.memory_space<vmem>>, vector<8x128xf32>
      tpu.vector_store %arg10[%c0_38, %c0_39], %42 {strides = array<i32>} : memref<8x128xf32, #tpu.memory_space<vmem>>, vector<8x128xf32>,
    } else {
    }
    return
  }
  func.func @transform_0(%arg0: i32, %arg1: i32, %arg2: i32) -> (i32, i32) {
    %c0_i32 = arith.constant 0 : i32
    return %arg0, %arg2 : i32, i32
  }
  func.func @transform_1(%arg0: i32, %arg1: i32, %arg2: i32) -> (i32, i32) {
    %c0_i32 = arith.constant 0 : i32
    return %arg0, %arg2 : i32, i32
  }
  func.func @transform_2(%arg0: i32, %arg1: i32, %arg2: i32) -> (i32, i32) {
    %c0_i32 = arith.constant 0 : i32
    return %arg0, %arg2 : i32, i32
  }
  func.func @transform_3(%arg0: i32, %arg1: i32, %arg2: i32) -> (i32, i32) {
    %c0_i32 = arith.constant 0 : i32
    return %arg1, %arg2 : i32, i32
  }
  func.func @transform_4(%arg0: i32, %arg1: i32, %arg2: i32) -> (i32, i32) {
    %c0_i32 = arith.constant 0 : i32
    %c0_i32_0 = arith.constant 0 : i32
    return %c0_i32, %arg1 : i32, i32
  }
  func.func @transform_5(%arg0: i32, %arg1: i32, %arg2: i32) -> (i32, i32) {
    %c0_i32 = arith.constant 0 : i32
    return %arg0, %arg1 : i32, i32
  }
  func.func @transform_6(%arg0: i32, %arg1: i32, %arg2: i32) -> (i32, i32) {
    %c0_i32 = arith.constant 0 : i32
    return %arg0, %arg1 : i32, i32
  }
  func.func @transform_7(%arg0: i32, %arg1: i32, %arg2: i32) -> (i32, i32) {
    %c0_i32 = arith.constant 0 : i32
    return %arg0, %arg1 : i32, i32
  }
}

</mosaic_0001>

<llo_original>
// kernel: tpu_custom_call.1
$region0: #{tpu_custom_call.1}
  #allocation0 [shape = 'u32[]', space=smem, size = 0x4, offset = 0x4, fixed_abs, tag = 'smem constant byte address 0x4 - core index']
  #allocation1 [shape = 'u32[72,128]{1,0:T(1,128)}', space=vmem, size = 0x9000, scoped, tag = 'internal scratch']
  #allocation2 [shape = 'f32[8,128]{1,0:T(8,128)}', space=vmem, size = 0x1000, scoped, tag = 'scratch operand']
  #allocation3 [shape = 'f32[8,128]{1,0:T(8,128)}', space=vmem, size = 0x1000, scoped, tag = 'scratch operand']
  #allocation4 [shape = 'f32[8,128]{1,0:T(8,128)}', space=vmem, size = 0x1000, scoped, tag = 'scratch operand']
  %s0 = inlined_call_operand.hbm [shape: f32[8,128], index: 0, kind: input, shape index: {}]
  %s1 = inlined_call_operand.hbm [shape: f32[8,128], index: 1, kind: input, shape index: {}]
  %s2 = inlined_call_operand.hbm [shape: f32[8,128], index: 2, kind: input, shape index: {}]
  %s3 = inlined_call_operand.hbm [shape: f32[128,128], index: 3, kind: input, shape index: {}]
  %s4 = inlined_call_operand.vmem [shape: f32[1,128], index: 4, kind: input, shape index: {}]
  %s5 = inlined_call_operand.hbm [shape: f32[8,128], index: 5, kind: output, shape index: {0}]
  %s6 = inlined_call_operand.hbm [shape: f32[8,128], index: 6, kind: output, shape index: {1}]
  %s7 = inlined_call_operand.hbm [shape: f32[8,128], index: 7, kind: output, shape index: {2}]
  %8 = xla_tuple %s5, %s6, %s7
  %s9 = sld [smem:[#allocation0]]
  $region70: #{tpu_custom_call.1} parent=0
    _
  %s11 = ssub.s32 1, %s9
  %s12 = scalar_select 0, %s11, %s9
  $region1: #{tpu_custom_call.1} parent=0
    #allocation5 [shape = 'u8[4096]{0}', space=vmem, size = 0x1000, scoped, tag = 'input window, operand 0, single buffered']
    #allocation6 [shape = 's32[1]{0}', space=sflag, size = 0x4, scoped, tag = 'scoped memory for tpu_custom_call.1']
    #allocation7 [shape = 's32[1]{0}', space=sflag, size = 0x4, scoped, tag = 'scoped memory for tpu_custom_call.1']
    #allocation8 [shape = 'u8[4096]{0}', space=vmem, size = 0x1000, scoped, tag = 'input window, operand 1, single buffered']
    #allocation9 [shape = 's32[1]{0}', space=sflag, size = 0x4, scoped, tag = 'scoped memory for tpu_custom_call.1']
    #allocation10 [shape = 'u8[4096]{0}', space=vmem, size = 0x1000, scoped, tag = 'input window, operand 2, single buffered']
    #allocation11 [shape = 'u8[65536]{0}', space=vmem, size = 0x10000, scoped, tag = 'input window, operand 3, single buffered']
    #allocation12 [shape = 's32[1]{0}', space=sflag, size = 0x4, scoped, tag = 'scoped memory for tpu_custom_call.1']
    #allocation13 [shape = 'u8[4096]{0}', space=vmem, size = 0x1000, scoped, tag = 'output window, operand 0, single buffered']
    #allocation14 [shape = 'u8[4096]{0}', space=vmem, size = 0x1000, scoped, tag = 'output window, operand 1, single buffered']
    #allocation15 [shape = 's32[1]{0}', space=sflag, size = 0x4, scoped, tag = 'scoped memory for tpu_custom_call.1']
    #allocation16 [shape = 'u8[4096]{0}', space=vmem, size = 0x1000, scoped, tag = 'output window, operand 2, single buffered']
    %13 = vsyncpa [#allocation6], 0
    %14 = vsyncpa [#allocation9], 0
    %15 = vsyncpa [#allocation12], 0
    %16 = vsyncpa [#allocation7], 0
    %17 = vsyncpa [#allocation15], 0
    // Predicated region
    $region2: #{tpu_custom_call.1} parent=1 // pred_check
      _
    $region3: #{tpu_custom_call.1} parent=1 // pred_check_branch
      %19 = sbr.rel (0) target = $region5
    $region4: #{tpu_custom_call.1} parent=1 // pred_region
      %21 = vsyncadd [#allocation6], 0
      %s23 = sshll.u32 %s0, 4
      %s24 = int_to_ptr.hbm [resolvable:$true] %s23
      %s25 = sshll.u32 [#allocation5], 4
      %s26 = int_to_ptr.vmem [resolvable:$true] %s25
      %28 = dma.hbm_to_vmem [thread:$0]  %s24, 128, %s26, [#allocation6]
    $region5: #{tpu_custom_call.1} parent=1 // pred_fallthru
      _
    // Predicated region
    $region6: #{tpu_custom_call.1} parent=1 // pred_check
      _
    $region7: #{tpu_custom_call.1} parent=1 // pred_check_branch
      %30 = sbr.rel (0) target = $region9
    $region8: #{tpu_custom_call.1} parent=1 // pred_region
      %32 = vsyncadd [#allocation9], 0
      %s34 = sshll.u32 %s1, 4
      %s35 = int_to_ptr.hbm [resolvable:$true] %s34
      %s36 = sshll.u32 [#allocation8], 4
      %s37 = int_to_ptr.vmem [resolvable:$true] %s36
      %39 = dma.hbm_to_vmem [thread:$0]  %s35, 128, %s37, [#allocation9]
    $region9: #{tpu_custom_call.1} parent=1 // pred_fallthru
      _
    // Predicated region
    $region10: #{tpu_custom_call.1} parent=1 // pred_check
      _
    $region11: #{tpu_custom_call.1} parent=1 // pred_check_branch
      %41 = sbr.rel (0) target = $region13
    $region12: #{tpu_custom_call.1} parent=1 // pred_region
      %43 = vsyncadd [#allocation9], 0
      %s45 = sshll.u32 %s2, 4
      %s46 = int_to_ptr.hbm [resolvable:$true] %s45
      %s47 = sshll.u32 [#allocation10], 4
      %s48 = int_to_ptr.vmem [resolvable:$true] %s47
      %50 = dma.hbm_to_vmem [thread:$0]  %s46, 128, %s48, [#allocation9]
    $region13: #{tpu_custom_call.1} parent=1 // pred_fallthru
      _
    // Predicated region
    $region14: #{tpu_custom_call.1} parent=1 // pred_check
      _
    $region15: #{tpu_custom_call.1} parent=1 // pred_check_branch
      %52 = sbr.rel (0) target = $region17
    $region16: #{tpu_custom_call.1} parent=1 // pred_region
      %54 = vsyncadd [#allocation12], 0
      %s55 = sshll.u32 %s3, 4
      %s56 = int_to_ptr.hbm [resolvable:$true] %s55
      %s57 = sshll.u32 [#allocation11], 4
      %s58 = int_to_ptr.vmem [resolvable:$true] %s57
      %63 = dma.hbm_to_vmem [thread:$0]  %s56, 2048, %s58, [#allocation12], 128, 128, 8
    $region17: #{tpu_custom_call.1} parent=1 // pred_fallthru
      _
    // Predicated region
    $region18: #{tpu_custom_call.1} parent=1 // pred_check
      _
    $region19: #{tpu_custom_call.1} parent=1 // pred_check_branch
      %65 = sbr.rel (0) target = $region21
    $region20: #{tpu_custom_call.1} parent=1 // pred_region
      _
    $region21: #{tpu_custom_call.1} parent=1 // pred_fallthru
      _
    // Predicated region
    $region22: #{tpu_custom_call.1} parent=1 // pred_check
      _
    $region23: #{tpu_custom_call.1} parent=1 // pred_check_branch
      %67 = sbr.rel (0) target = $region25
    $region24: #{tpu_custom_call.1} parent=1 // pred_region
      %69 = dma.done [#allocation6], 128
    $region25: #{tpu_custom_call.1} parent=1 // pred_fallthru
      _
    // Predicated region
    $region26: #{tpu_custom_call.1} parent=1 // pred_check
      _
    $region27: #{tpu_custom_call.1} parent=1 // pred_check_branch
      %71 = sbr.rel (0) target = $region29
    $region28: #{tpu_custom_call.1} parent=1 // pred_region
      %73 = dma.done [#allocation9], 128
    $region29: #{tpu_custom_call.1} parent=1 // pred_fallthru
      _
    // Predicated region
    $region30: #{tpu_custom_call.1} parent=1 // pred_check
      _
    $region31: #{tpu_custom_call.1} parent=1 // pred_check_branch
      %75 = sbr.rel (0) target = $region33
    $region32: #{tpu_custom_call.1} parent=1 // pred_region
      %77 = dma.done [#allocation9], 128
    $region33: #{tpu_custom_call.1} parent=1 // pred_fallthru
      _
    // Predicated region
    $region34: #{tpu_custom_call.1} parent=1 // pred_check
      _
    $region35: #{tpu_custom_call.1} parent=1 // pred_check_branch
      %79 = sbr.rel (0) target = $region37
    $region36: #{tpu_custom_call.1} parent=1 // pred_region
      %81 = dma.done [#allocation12], 2048
    $region37: #{tpu_custom_call.1} parent=1 // pred_fallthru
      _
    %p82 = scmp.eq.s32.totalorder 0, 0
    // Predicated region
    $region38: #{tpu_custom_call.1} parent=1 // pred_check
      %p83 = pneg %p82
    $region39: #{tpu_custom_call.1} parent=1 // pred_check_branch
      %85 = sbr.rel (%p83) target = $region41
    $region40: #{tpu_custom_call.1} parent=1 // pred_region
      %86 = vst [vmem:[#allocation2] sm:$0xff] 0.0
      %87 = vst [vmem:[#allocation3] sm:$0xff] 0.0
      %88 = vst [vmem:[#allocation4] sm:$0xff] 0.0
    $region41: #{tpu_custom_call.1} parent=1 // pred_fallthru
      _
    %v89 = vld [vmem:[#allocation5] sm:$0xff]
    %v90 = vld [vmem:[#allocation8] sm:$0xff]
    %v91 = vld [vmem:[#allocation10] sm:$0xff]
    %v92 = vadd.f32 %v90, %v91
    %v93 = vsub.f32 %v90, %v91
    %v94 = vld [vmem:[#allocation11] sm:$0xff]
    %v95 = vld [vmem:[#allocation11 + $0x8] sm:$0xff]
    %v96 = vld [vmem:[#allocation11 + $0x10] sm:$0xff]
    %v97 = vld [vmem:[#allocation11 + $0x18] sm:$0xff]
    %v98 = vld [vmem:[#allocation11 + $0x20] sm:$0xff]
    %v99 = vld [vmem:[#allocation11 + $0x28] sm:$0xff]
    %v100 = vld [vmem:[#allocation11 + $0x30] sm:$0xff]
    %v101 = vld [vmem:[#allocation11 + $0x38] sm:$0xff]
    %v102 = vld [vmem:[#allocation11 + $0x40] sm:$0xff]
    %v103 = vld [vmem:[#allocation11 + $0x48] sm:$0xff]
    %v104 = vld [vmem:[#allocation11 + $0x50] sm:$0xff]
    %v105 = vld [vmem:[#allocation11 + $0x58] sm:$0xff]
    %v106 = vld [vmem:[#allocation11 + $0x60] sm:$0xff]
    %v107 = vld [vmem:[#allocation11 + $0x68] sm:$0xff]
    %v108 = vld [vmem:[#allocation11 + $0x70] sm:$0xff]
    %v109 = vld [vmem:[#allocation11 + $0x78] sm:$0xff]
    %v110 = vand.u32 2147483647, %v94
    %v111 = vand.u32 2147483647, %v95
    %v112 = vand.u32 2147483647, %v96
    %v113 = vand.u32 2147483647, %v97
    %v114 = vand.u32 2147483647, %v98
    %v115 = vand.u32 2147483647, %v99
    %v116 = vand.u32 2147483647, %v100
    %v117 = vand.u32 2147483647, %v101
    %v118 = vand.u32 2147483647, %v102
    %v119 = vand.u32 2147483647, %v103
    %v120 = vand.u32 2147483647, %v104
    %v121 = vand.u32 2147483647, %v105
    %v122 = vand.u32 2147483647, %v106
    %v123 = vand.u32 2147483647, %v107
    %v124 = vand.u32 2147483647, %v108
    %v125 = vand.u32 2147483647, %v109
    %v126 = vld [vmem:[#allocation2] sm:$0xff]
    %127 = vmatpush.xpose.msra.mxu0 %v109
    %128 = vmatpush.xpose.msra.mxu0 %v108
    %129 = vmatpush.xpose.msra.mxu0 %v107
    %130 = vmatpush.xpose.msra.mxu0 %v106
    %131 = vmatpush.xpose.msra.mxu0 %v105
    %132 = vmatpush.xpose.msra.mxu0 %v104
    %133 = vmatpush.xpose.msra.mxu0 %v103
    %134 = vmatpush.xpose.msra.mxu0 %v102
    %135 = vmatpush.xpose.msra.mxu0 %v101
    %136 = vmatpush.xpose.msra.mxu0 %v100
    %137 = vmatpush.xpose.msra.mxu0 %v99
    %138 = vmatpush.xpose.msra.mxu0 %v98
    %139 = vmatpush.xpose.msra.mxu0 %v97
    %140 = vmatpush.xpose.msra.mxu0 %v96
    %141 = vmatpush.xpose.msra.mxu0 %v95
    %142 = vmatpush.xpose.msra.mxu0 %v94
    %143 = vmatmul.f32.gmra.mxu0 %v89
    %v144 = vpop.f32.mrf.mxu0
    %v145 = vadd.f32 0.0, %v144
    %146 = vdwg.mxu0
    %v147 = vadd.f32 %v126, %v145
    %148 = vst [vmem:[#allocation2] sm:$0xff] %v147
    %v149 = vld [vmem:[#allocation3] sm:$0xff]
    %150 = vmatpush.xpose.msra.mxu0 %v109
    %151 = vmatpush.xpose.msra.mxu0 %v108
    %152 = vmatpush.xpose.msra.mxu0 %v107
    %153 = vmatpush.xpose.msra.mxu0 %v106
    %154 = vmatpush.xpose.msra.mxu0 %v105
    %155 = vmatpush.xpose.msra.mxu0 %v104
    %156 = vmatpush.xpose.msra.mxu0 %v103
    %157 = vmatpush.xpose.msra.mxu0 %v102
    %158 = vmatpush.xpose.msra.mxu0 %v101
    %159 = vmatpush.xpose.msra.mxu0 %v100
    %160 = vmatpush.xpose.msra.mxu0 %v99
    %161 = vmatpush.xpose.msra.mxu0 %v98
    %162 = vmatpush.xpose.msra.mxu0 %v97
    %163 = vmatpush.xpose.msra.mxu0 %v96
    %164 = vmatpush.xpose.msra.mxu0 %v95
    %165 = vmatpush.xpose.msra.mxu0 %v94
    %166 = vmatmul.f32.gmra.mxu0 %v92
    %v167 = vpop.f32.mrf.mxu0
    %v168 = vadd.f32 0.0, %v167
    %169 = vdwg.mxu0
    %v170 = vadd.f32 %v149, %v168
    %171 = vst [vmem:[#allocation3] sm:$0xff] %v170
    %v172 = vld [vmem:[#allocation4] sm:$0xff]
    %173 = vmatpush.xpose.msra.mxu0 %v125
    %174 = vmatpush.xpose.msra.mxu0 %v124
    %175 = vmatpush.xpose.msra.mxu0 %v123
    %176 = vmatpush.xpose.msra.mxu0 %v122
    %177 = vmatpush.xpose.msra.mxu0 %v121
    %178 = vmatpush.xpose.msra.mxu0 %v120
    %179 = vmatpush.xpose.msra.mxu0 %v119
    %180 = vmatpush.xpose.msra.mxu0 %v118
    %181 = vmatpush.xpose.msra.mxu0 %v117
    %182 = vmatpush.xpose.msra.mxu0 %v116
    %183 = vmatpush.xpose.msra.mxu0 %v115
    %184 = vmatpush.xpose.msra.mxu0 %v114
    %185 = vmatpush.xpose.msra.mxu0 %v113
    %186 = vmatpush.xpose.msra.mxu0 %v112
    %187 = vmatpush.xpose.msra.mxu0 %v111
    %188 = vmatpush.xpose.msra.mxu0 %v110
    %189 = vmatmul.f32.gmra.mxu0 %v93
    %v190 = vpop.f32.mrf.mxu0
    %v191 = vadd.f32 0.0, %v190
    %192 = vdwg.mxu0
    %v193 = vadd.f32 %v172, %v191
    %194 = vst [vmem:[#allocation4] sm:$0xff] %v193
    // Predicated region
    $region42: #{tpu_custom_call.1} parent=1 // pred_check
      %p195 = pneg %p82
    $region43: #{tpu_custom_call.1} parent=1 // pred_check_branch
      %197 = sbr.rel (%p195) target = $region45
    $region44: #{tpu_custom_call.1} parent=1 // pred_region
      %v198 = vld [vmem:[%s4] sm:$0x1]
      %v199 = vld [vmem:[#allocation3] sm:$0xff]
      %v200 = vld [vmem:[#allocation4] sm:$0xff]
      %v201 = vld [vmem:[#allocation2] sm:$0xff]
      %v203 = vperm.slane %v198, 0
      %v205 = vadd.f32 %v201, %v203
      %206 = vst [vmem:[#allocation13] sm:$0xff] %v205
      %v207 = vadd.f32 %v199, %v200
      %v208 = vmul.f32 %v207, 0.5
      %v209 = vadd.f32 %v208, %v203
      %210 = vst [vmem:[#allocation14] sm:$0xff] %v209
      %v211 = vsub.f32 %v199, %v200
      %v212 = vmul.f32 %v211, 0.5
      %v213 = vadd.f32 %v212, %v203
      %214 = vst [vmem:[#allocation16] sm:$0xff] %v213
    $region45: #{tpu_custom_call.1} parent=1 // pred_fallthru
      _
    // Predicated region
    $region46: #{tpu_custom_call.1} parent=1 // pred_check
      _
    $region47: #{tpu_custom_call.1} parent=1 // pred_check_branch
      %216 = sbr.rel (0) target = $region49
    $region48: #{tpu_custom_call.1} parent=1 // pred_region
      %218 = vsyncadd [#allocation7], 0
      %s220 = sshll.u32 [#allocation13], 4
      %s221 = int_to_ptr.vmem [resolvable:$true] %s220
      %s222 = sshll.u32 %s5, 4
      %s223 = int_to_ptr.hbm [resolvable:$true] %s222
      %225 = dma.vmem_to_hbm [thread:$0]  %s221, 128, %s223, [#allocation7]
    $region49: #{tpu_custom_call.1} parent=1 // pred_fallthru
      _
    // Predicated region
    $region50: #{tpu_custom_call.1} parent=1 // pred_check
      _
    $region51: #{tpu_custom_call.1} parent=1 // pred_check_branch
      %227 = sbr.rel (0) target = $region53
    $region52: #{tpu_custom_call.1} parent=1 // pred_region
      %229 = vsyncadd [#allocation15], 0
      %s231 = sshll.u32 [#allocation14], 4
      %s232 = int_to_ptr.vmem [resolvable:$true] %s231
      %s233 = sshll.u32 %s6, 4
      %s234 = int_to_ptr.hbm [resolvable:$true] %s233
      %236 = dma.vmem_to_hbm [thread:$0]  %s232, 128, %s234, [#allocation15]
    $region53: #{tpu_custom_call.1} parent=1 // pred_fallthru
      _
    // Predicated region
    $region54: #{tpu_custom_call.1} parent=1 // pred_check
      _
    $region55: #{tpu_custom_call.1} parent=1 // pred_check_branch
      %238 = sbr.rel (0) target = $region57
    $region56: #{tpu_custom_call.1} parent=1 // pred_region
      %240 = vsyncadd [#allocation15], 0
      %s242 = sshll.u32 [#allocation16], 4
      %s243 = int_to_ptr.vmem [resolvable:$true] %s242
      %s244 = sshll.u32 %s7, 4
      %s245 = int_to_ptr.hbm [resolvable:$true] %s244
      %247 = dma.vmem_to_hbm [thread:$0]  %s243, 128, %s245, [#allocation15]
    $region57: #{tpu_custom_call.1} parent=1 // pred_fallthru
      _
    // Predicated region
    $region58: #{tpu_custom_call.1} parent=1 // pred_check
      _
    $region59: #{tpu_custom_call.1} parent=1 // pred_check_branch
      %249 = sbr.rel (0) target = $region61
    $region60: #{tpu_custom_call.1} parent=1 // pred_region
      %251 = dma.done [#allocation7], 128
    $region61: #{tpu_custom_call.1} parent=1 // pred_fallthru
      _
    // Predicated region
    $region62: #{tpu_custom_call.1} parent=1 // pred_check
      _
    $region63: #{tpu_custom_call.1} parent=1 // pred_check_branch
      %253 = sbr.rel (0) target = $region65
    $region64: #{tpu_custom_call.1} parent=1 // pred_region
      %255 = dma.done [#allocation15], 128
    $region65: #{tpu_custom_call.1} parent=1 // pred_fallthru
      _
    // Predicated region
    $region66: #{tpu_custom_call.1} parent=1 // pred_check
      _
    $region67: #{tpu_custom_call.1} parent=1 // pred_check_branch
      %257 = sbr.rel (0) target = $region69
    $region68: #{tpu_custom_call.1} parent=1 // pred_region
      %259 = dma.done [#allocation15], 128
    $region69: #{tpu_custom_call.1} parent=1 // pred_fallthru
      _
    %260 = vsyncpa [#allocation6], 1
    %261 = vsyncpa [#allocation9], 1
    %262 = vsyncpa [#allocation12], 1
    %263 = vsyncpa [#allocation7], 1
    %264 = vsyncpa [#allocation15], 1

</llo_original>
